<compile_context>
chip_gen: v7x
topology: tpu7x:2x2x1
jax: 0.10.0
libtpu: 0.0.40
codegen_flags: <defaults>
</compile_context>

<pallas_src>
import jax
import jax.numpy as jnp
from jax.experimental import pallas as pl
from jax.experimental.pallas import tpu as pltpu

AUD_SIZE = 192
IMG_SIZE = 512
HID_SIZE = 192          # hidden width of the merged stack (== aud_size)
OUT_SIZE = 2
OUT_PAD = 128           # lane-dense padded output width (>= 128 lanes)


def matchnet_kernel(xa_ref, xi_ref, wa_ref, wi_ref, b1_ref, w2_ref, b2_ref, o_ref):
    # Fused first stage: relu(x_aud @ Wa' + x_img @ Wi' + b')
    h = (jnp.dot(xa_ref[...], wa_ref[...], preferred_element_type=jnp.float32)
         + jnp.dot(xi_ref[...], wi_ref[...], preferred_element_type=jnp.float32)
         + b1_ref[...])
    h = jnp.maximum(h, 0.0)                               # ReLU

    # Lane-dense padded head: Linear(192 -> 128), real outputs are cols [:2].
    w2 = w2_ref[...]
    out = jnp.dot(h.astype(w2.dtype), w2,
                  preferred_element_type=jnp.float32) + b2_ref[...]
    o_ref[...] = out


def fuse_params(params, use_bf16=False):
    """Fold aud/img layers into W1 and pad the output head to 128 lanes."""
    w1a = params["w1"][:AUD_SIZE, :]                      # [192, 192]
    w1i = params["w1"][AUD_SIZE:, :]                      # [512->? no: 192, 192]
    wa = params["w_aud"] @ w1a                            # [192, 192]
    wi = params["w_img"] @ w1i                            # [512, 192]
    b1 = params["b_aud"] @ w1a + params["b_img"] @ w1i + params["b1"]   # [1, 192]

    w2 = jnp.zeros((HID_SIZE, OUT_PAD), jnp.float32).at[:, :OUT_SIZE].set(params["w2"])
    b2 = jnp.zeros((1, OUT_PAD), jnp.float32).at[:, :OUT_SIZE].set(params["b2"])

    cdt = jnp.bfloat16 if use_bf16 else jnp.float32
    return dict(wa=wa.astype(cdt), wi=wi.astype(cdt), b1=b1.astype(jnp.float32),
                w2=w2.astype(cdt), b2=b2.astype(jnp.float32))


def matchnet_forward(x, params, *, tile_b=512, use_bf16=False):
    B = x.shape[0]
    fp = fuse_params(params, use_bf16)
    cdt = jnp.bfloat16 if use_bf16 else jnp.float32

    # Pre-split on the host so each input DMAs as a clean rectangular tile.
    x_aud = x[:, :AUD_SIZE].astype(cdt)
    x_img = x[:, AUD_SIZE:AUD_SIZE + IMG_SIZE].astype(cdt)

    # Batch tiling (sublane alignment: 8 for f32, 16 for bf16); pad B if needed.
    align = 16 if use_bf16 else 8
    tile_b = max(align, min(tile_b, pl.cdiv(B, align) * align))
    b_pad = pl.cdiv(B, tile_b) * tile_b
    if b_pad != B:
        pad = ((0, b_pad - B), (0, 0))
        x_aud = jnp.pad(x_aud, pad)
        x_img = jnp.pad(x_img, pad)

    grid = (b_pad // tile_b,)
    itemsize = jnp.dtype(cdt).itemsize
    n_weight = AUD_SIZE * HID_SIZE + IMG_SIZE * HID_SIZE + HID_SIZE * OUT_PAD
    cost = pl.CostEstimate(
        flops=2 * b_pad * n_weight,
        transcendentals=0,
        bytes_accessed=(b_pad * (AUD_SIZE + IMG_SIZE) * itemsize    # stream x
                        + b_pad * OUT_PAD * 4                       # out (f32)
                        + n_weight * itemsize),                     # resident weights
    )

    out = pl.pallas_call(
        matchnet_kernel,
        out_shape=jax.ShapeDtypeStruct((b_pad, OUT_PAD), jnp.float32),
        grid=grid,
        in_specs=[
            pl.BlockSpec((tile_b, AUD_SIZE), lambda i: (i, 0)),     # x_aud tile
            pl.BlockSpec((tile_b, IMG_SIZE), lambda i: (i, 0)),     # x_img tile
            pl.BlockSpec((AUD_SIZE, HID_SIZE), lambda i: (0, 0)),   # wa (resident)
            pl.BlockSpec((IMG_SIZE, HID_SIZE), lambda i: (0, 0)),   # wi (resident)
            pl.BlockSpec((1, HID_SIZE), lambda i: (0, 0)),          # fused bias
            pl.BlockSpec((HID_SIZE, OUT_PAD), lambda i: (0, 0)),    # padded head W
            pl.BlockSpec((1, OUT_PAD), lambda i: (0, 0)),           # padded head b
        ],
        out_specs=pl.BlockSpec((tile_b, OUT_PAD), lambda i: (i, 0)),
        compiler_params=pltpu.CompilerParams(
            dimension_semantics=("parallel",)),
        cost_estimate=cost,
    )(x_aud, x_img, fp["wa"], fp["wi"], fp["b1"], fp["w2"], fp["b2"])

    return out[:B, :OUT_SIZE]


def init_params(key):
    """Deterministic PyTorch-style (Kaiming-uniform) init; weights stored [in, out]."""
    def linear(key, fan_in, fan_out):
        kw, kb = jax.random.split(key)
        bound = 1.0 / jnp.sqrt(jnp.float32(fan_in))
        w = jax.random.uniform(kw, (fan_in, fan_out), jnp.float32, -bound, bound)
        b = jax.random.uniform(kb, (1, fan_out), jnp.float32, -bound, bound)
        return w, b

    k1, k2, k3, k4 = jax.random.split(key, 4)
    w_img, b_img = linear(k1, IMG_SIZE, AUD_SIZE)
    w_aud, b_aud = linear(k2, AUD_SIZE, AUD_SIZE)
    w1, b1 = linear(k3, AUD_SIZE * 2, AUD_SIZE)
    w2, b2 = linear(k4, AUD_SIZE, OUT_SIZE)
    return dict(w_img=w_img, b_img=b_img, w_aud=w_aud, b_aud=b_aud,
                w1=w1, b1=b1, w2=w2, b2=b2)


def matchnet_reference(x, p):
    """Unfused reference matching the PyTorch forward structure."""
    x_aud = x[:, :AUD_SIZE]
    x_img = x[:, AUD_SIZE:]
    h_img = x_img @ p["w_img"] + p["b_img"]
    h_aud = x_aud @ p["w_aud"] + p["b_aud"]
    h = jnp.concatenate([h_aud, h_img], axis=1)
    h = jnp.maximum(h @ p["w1"] + p["b1"], 0.0)
    return h @ p["w2"] + p["b2"]


if __name__ == "__main__":
    key = jax.random.PRNGKey(0)
    k_x, k_p, k_x2 = jax.random.split(key, 3)
    params = init_params(k_p)

    # Small case (single grid step).
    B = 8
    x = jax.random.normal(k_x, (B, AUD_SIZE + IMG_SIZE), jnp.float32)
    out = jax.block_until_ready(matchnet_forward(x, params))
    ref = matchnet_reference(x, params)
    assert out.shape == (B, OUT_SIZE)
    assert jnp.allclose(out, ref, atol=1e-3, rtol=1e-3), \
        float(jnp.max(jnp.abs(out - ref)))

    # Larger case exercising the batch grid + row padding path.
    B2 = 1000
    x2 = jax.random.normal(k_x2, (B2, AUD_SIZE + IMG_SIZE), jnp.float32)
    out2 = jax.block_until_ready(matchnet_forward(x2, params, tile_b=512))
    ref2 = matchnet_reference(x2, params)
    assert out2.shape == (B2, OUT_SIZE)
    assert jnp.allclose(out2, ref2, atol=1e-3, rtol=1e-3), \
        float(jnp.max(jnp.abs(out2 - ref2)))

    # bf16 MXU path (v6e/v7x) with f32 accumulation; looser tolerance.
    out_bf16 = jax.block_until_ready(matchnet_forward(x2, params, use_bf16=True))
    assert jnp.allclose(out_bf16, ref2, atol=5e-2, rtol=5e-2)

    print("KERNEL_OK")
</pallas_src>

<mosaic_0001>
module attributes {stable_mosaic.version = 11 : i64} {
  func.func @matchnet_kernel(%arg0: i32, %arg1: memref<8x192xf32, #tpu.memory_space<vmem>>, %arg2: memref<8x512xf32, #tpu.memory_space<vmem>>, %arg3: memref<192x192xf32, #tpu.memory_space<vmem>>, %arg4: memref<512x192xf32, #tpu.memory_space<vmem>>, %arg5: memref<1x192xf32, #tpu.memory_space<vmem>>, %arg6: memref<192x128xf32, #tpu.memory_space<vmem>>, %arg7: memref<1x128xf32, #tpu.memory_space<vmem>>, %arg8: memref<8x128xf32, #tpu.memory_space<vmem>>) attributes {dimension_semantics = [#tpu.dimension_semantics<parallel>], iteration_bounds = array<i64: 1>, scalar_prefetch = 0 : i64, scratch_operands = 0 : i64, tpu.core_type = #tpu.core_type<tc>, window_params = [{transform_indices = @transform_0, window_bounds = array<i64: 8, 192>}, {transform_indices = @transform_1, window_bounds = array<i64: 8, 512>}, {pipeline_mode = #tpu.pipeline_mode<synchronous>, transform_indices = @transform_2, window_bounds = array<i64: 192, 192>}, {pipeline_mode = #tpu.pipeline_mode<synchronous>, transform_indices = @transform_3, window_bounds = array<i64: 512, 192>}, {pipeline_mode = #tpu.pipeline_mode<synchronous>, transform_indices = @transform_4, window_bounds = array<i64: 1, 192>}, {pipeline_mode = #tpu.pipeline_mode<synchronous>, transform_indices = @transform_5, window_bounds = array<i64: 192, 128>}, {pipeline_mode = #tpu.pipeline_mode<synchronous>, transform_indices = @transform_6, window_bounds = array<i64: 1, 128>}, {transform_indices = @transform_7, window_bounds = array<i64: 8, 128>}]} {
    %c0 = arith.constant 0 : index
    %c0_0 = arith.constant 0 : index
    %0 = vector.load %arg1[%c0, %c0_0] : memref<8x192xf32, #tpu.memory_space<vmem>>, vector<8x192xf32>
    %c0_1 = arith.constant 0 : index
    %c0_2 = arith.constant 0 : index
    %1 = vector.load %arg3[%c0_1, %c0_2] : memref<192x192xf32, #tpu.memory_space<vmem>>, vector<192x192xf32>
    %cst = arith.constant dense<0.000000e+00> : vector<8x192xf32>
    %2 = tpu.matmul %0, %1, %cst {dimension_numbers = #tpu.dot_dimension_numbers<[1], [0], [0], [1], [0, 0, 1, 1], [], []>} : vector<8x192xf32>, vector<192x192xf32>, vector<8x192xf32> -> vector<8x192xf32>
    %c0_3 = arith.constant 0 : index
    %c0_4 = arith.constant 0 : index
    %3 = vector.load %arg2[%c0_3, %c0_4] : memref<8x512xf32, #tpu.memory_space<vmem>>, vector<8x512xf32>
    %c0_5 = arith.constant 0 : index
    %c0_6 = arith.constant 0 : index
    %4 = vector.load %arg4[%c0_5, %c0_6] : memref<512x192xf32, #tpu.memory_space<vmem>>, vector<512x192xf32>
    %cst_7 = arith.constant dense<0.000000e+00> : vector<8x192xf32>
    %5 = tpu.matmul %3, %4, %cst_7 {dimension_numbers = #tpu.dot_dimension_numbers<[1], [0], [0], [1], [0, 0, 1, 1], [], []>} : vector<8x512xf32>, vector<512x192xf32>, vector<8x192xf32> -> vector<8x192xf32>
    %6 = arith.addf %2, %5 : vector<8x192xf32>
    %c0_8 = arith.constant 0 : index
    %c0_9 = arith.constant 0 : index
    %7 = vector.load %arg5[%c0_8, %c0_9] : memref<1x192xf32, #tpu.memory_space<vmem>>, vector<1x192xf32>
    %8 = vector.broadcast %7 : vector<1x192xf32> to vector<8x192xf32>
    %9 = arith.addf %6, %8 : vector<8x192xf32>
    %cst_10 = arith.constant 0.000000e+00 : f32
    %10 = vector.broadcast %cst_10 : f32 to vector<8x192xf32>
    %11 = arith.maximumf %9, %10 : vector<8x192xf32>
    %c0_11 = arith.constant 0 : index
    %c0_12 = arith.constant 0 : index
    %12 = vector.load %arg6[%c0_11, %c0_12] : memref<192x128xf32, #tpu.memory_space<vmem>>, vector<192x128xf32>
    %cst_13 = arith.constant dense<0.000000e+00> : vector<8x128xf32>
    %13 = tpu.matmul %11, %12, %cst_13 {dimension_numbers = #tpu.dot_dimension_numbers<[1], [0], [0], [1], [0, 0, 1, 1], [], []>} : vector<8x192xf32>, vector<192x128xf32>, vector<8x128xf32> -> vector<8x128xf32>
    %c0_14 = arith.constant 0 : index
    %c0_15 = arith.constant 0 : index
    %14 = vector.load %arg7[%c0_14, %c0_15] : memref<1x128xf32, #tpu.memory_space<vmem>>, vector<1x128xf32>
    %15 = vector.broadcast %14 : vector<1x128xf32> to vector<8x128xf32>
    %16 = arith.addf %13, %15 : vector<8x128xf32>
    %c0_16 = arith.constant 0 : index
    %c0_17 = arith.constant 0 : index
    %17 = vector.load %arg8[%c0_16, %c0_17] : memref<8x128xf32, #tpu.memory_space<vmem>>, vector<8x128xf32>
    tpu.vector_store %arg8[%c0_16, %c0_17], %16 {strides = array<i32>} : memref<8x128xf32, #tpu.memory_space<vmem>>, vector<8x128xf32>,
    return
  }
  func.func @transform_0(%arg0: i32) -> (i32, i32) {
    %c0_i32 = arith.constant 0 : i32
    %c0_i32_0 = arith.constant 0 : i32
    return %arg0, %c0_i32 : i32, i32
  }
  func.func @transform_1(%arg0: i32) -> (i32, i32) {
    %c0_i32 = arith.constant 0 : i32
    %c0_i32_0 = arith.constant 0 : i32
    return %arg0, %c0_i32 : i32, i32
  }
  func.func @transform_2(%arg0: i32) -> (i32, i32) {
    %c0_i32 = arith.constant 0 : i32
    %c0_i32_0 = arith.constant 0 : i32
    %c0_i32_1 = arith.constant 0 : i32
    return %c0_i32, %c0_i32_0 : i32, i32
  }
  func.func @transform_3(%arg0: i32) -> (i32, i32) {
    %c0_i32 = arith.constant 0 : i32
    %c0_i32_0 = arith.constant 0 : i32
    %c0_i32_1 = arith.constant 0 : i32
    return %c0_i32, %c0_i32_0 : i32, i32
  }
  func.func @transform_4(%arg0: i32) -> (i32, i32) {
    %c0_i32 = arith.constant 0 : i32
    %c0_i32_0 = arith.constant 0 : i32
    %c0_i32_1 = arith.constant 0 : i32
    return %c0_i32, %c0_i32_0 : i32, i32
  }
  func.func @transform_5(%arg0: i32) -> (i32, i32) {
    %c0_i32 = arith.constant 0 : i32
    %c0_i32_0 = arith.constant 0 : i32
    %c0_i32_1 = arith.constant 0 : i32
    return %c0_i32, %c0_i32_0 : i32, i32
  }
  func.func @transform_6(%arg0: i32) -> (i32, i32) {
    %c0_i32 = arith.constant 0 : i32
    %c0_i32_0 = arith.constant 0 : i32
    %c0_i32_1 = arith.constant 0 : i32
    return %c0_i32, %c0_i32_0 : i32, i32
  }
  func.func @transform_7(%arg0: i32) -> (i32, i32) {
    %c0_i32 = arith.constant 0 : i32
    %c0_i32_0 = arith.constant 0 : i32
    return %arg0, %c0_i32 : i32, i32
  }
}

</mosaic_0001>

<llo_original>
// kernel: tpu_custom_call.1
$region0: #{tpu_custom_call.1}
  #allocation0 [shape = 'u32[]', space=smem, size = 0x4, offset = 0x4, fixed_abs, tag = 'smem constant byte address 0x4 - core index']
  #allocation1 [shape = 'u32[144,128]{1,0:T(1,128)}', space=vmem, size = 0x12000, scoped, tag = 'internal scratch']
  %s0 = inlined_call_operand.vmem [shape: f32[8,192], index: 0, kind: input, shape index: {}]
  %s1 = inlined_call_operand.vmem [shape: f32[8,512], index: 1, kind: input, shape index: {}]
  %s2 = inlined_call_operand.vmem [shape: f32[192,192], index: 2, kind: input, shape index: {}]
  %s3 = inlined_call_operand.vmem [shape: f32[512,192], index: 3, kind: input, shape index: {}]
  %s4 = inlined_call_operand.vmem [shape: f32[1,192], index: 4, kind: input, shape index: {}]
  %s5 = inlined_call_operand.vmem [shape: f32[192,128], index: 5, kind: input, shape index: {}]
  %s6 = inlined_call_operand.vmem [shape: f32[1,128], index: 6, kind: input, shape index: {}]
  %s7 = inlined_call_operand.hbm [shape: f32[8,128], index: 7, kind: output, shape index: {}]
  %s8 = sld [smem:[#allocation0]]
  $region38: #{tpu_custom_call.1} parent=0
    _
  %s10 = ssub.s32 1, %s8
  %s11 = scalar_select 0, %s10, %s8
  $region1: #{tpu_custom_call.1} parent=0
    #allocation2 [shape = 'u8[4096]{0}', space=vmem, size = 0x1000, scoped, tag = 'output window, operand 0, single buffered']
    #allocation3 [shape = 's32[1]{0}', space=sflag, size = 0x4, scoped, tag = 'scoped memory for tpu_custom_call.1']
    %12 = vsyncpa [#allocation3], 0
    // Predicated region
    $region2: #{tpu_custom_call.1} parent=1 // pred_check
      _
    $region3: #{tpu_custom_call.1} parent=1 // pred_check_branch
      %14 = sbr.rel (0) target = $region5
    $region4: #{tpu_custom_call.1} parent=1 // pred_region
      _
    $region5: #{tpu_custom_call.1} parent=1 // pred_fallthru
      _
    // Predicated region
    $region6: #{tpu_custom_call.1} parent=1 // pred_check
      _
    $region7: #{tpu_custom_call.1} parent=1 // pred_check_branch
      %16 = sbr.rel (0) target = $region9
    $region8: #{tpu_custom_call.1} parent=1 // pred_region
      _
    $region9: #{tpu_custom_call.1} parent=1 // pred_fallthru
      _
    // Predicated region
    $region10: #{tpu_custom_call.1} parent=1 // pred_check
      _
    $region11: #{tpu_custom_call.1} parent=1 // pred_check_branch
      %18 = sbr.rel (0) target = $region13
    $region12: #{tpu_custom_call.1} parent=1 // pred_region
      _
    $region13: #{tpu_custom_call.1} parent=1 // pred_fallthru
      _
    // Predicated region
    $region14: #{tpu_custom_call.1} parent=1 // pred_check
      _
    $region15: #{tpu_custom_call.1} parent=1 // pred_check_branch
      %20 = sbr.rel (0) target = $region17
    $region16: #{tpu_custom_call.1} parent=1 // pred_region
      _
    $region17: #{tpu_custom_call.1} parent=1 // pred_fallthru
      _
    // Predicated region
    $region18: #{tpu_custom_call.1} parent=1 // pred_check
      _
    $region19: #{tpu_custom_call.1} parent=1 // pred_check_branch
      %22 = sbr.rel (0) target = $region21
    $region20: #{tpu_custom_call.1} parent=1 // pred_region
      _
    $region21: #{tpu_custom_call.1} parent=1 // pred_fallthru
      _
    // Predicated region
    $region22: #{tpu_custom_call.1} parent=1 // pred_check
      _
    $region23: #{tpu_custom_call.1} parent=1 // pred_check_branch
      %24 = sbr.rel (0) target = $region25
    $region24: #{tpu_custom_call.1} parent=1 // pred_region
      _
    $region25: #{tpu_custom_call.1} parent=1 // pred_fallthru
      _
    // Predicated region
    $region26: #{tpu_custom_call.1} parent=1 // pred_check
      _
    $region27: #{tpu_custom_call.1} parent=1 // pred_check_branch
      %26 = sbr.rel (0) target = $region29
    $region28: #{tpu_custom_call.1} parent=1 // pred_region
      _
    $region29: #{tpu_custom_call.1} parent=1 // pred_fallthru
      _
    %v27 = vld [vmem:[%s0] sm:$0xff]
    %v28 = vld [vmem:[%s0 + $0x8] sm:$0xff]
    %v29 = vld [vmem:[%s2] sm:$0xff]
    %v30 = vld [vmem:[%s2 + $0x8] sm:$0xff]
    %v31 = vld [vmem:[%s2 + $0x10] sm:$0xff]
    %v32 = vld [vmem:[%s2 + $0x18] sm:$0xff]
    %v33 = vld [vmem:[%s2 + $0x20] sm:$0xff]
    %v34 = vld [vmem:[%s2 + $0x28] sm:$0xff]
    %v35 = vld [vmem:[%s2 + $0x30] sm:$0xff]
    %v36 = vld [vmem:[%s2 + $0x38] sm:$0xff]
    %v37 = vld [vmem:[%s2 + $0x40] sm:$0xff]
    %v38 = vld [vmem:[%s2 + $0x48] sm:$0xff]
    %v39 = vld [vmem:[%s2 + $0x50] sm:$0xff]
    %v40 = vld [vmem:[%s2 + $0x58] sm:$0xff]
    %v41 = vld [vmem:[%s2 + $0x60] sm:$0xff]
    %v42 = vld [vmem:[%s2 + $0x68] sm:$0xff]
    %v43 = vld [vmem:[%s2 + $0x70] sm:$0xff]
    %v44 = vld [vmem:[%s2 + $0x78] sm:$0xff]
    %v45 = vld [vmem:[%s2 + $0x80] sm:$0xff]
    %v46 = vld [vmem:[%s2 + $0x88] sm:$0xff]
    %v47 = vld [vmem:[%s2 + $0x90] sm:$0xff]
    %v48 = vld [vmem:[%s2 + $0x98] sm:$0xff]
    %v49 = vld [vmem:[%s2 + $0xa0] sm:$0xff]
    %v50 = vld [vmem:[%s2 + $0xa8] sm:$0xff]
    %v51 = vld [vmem:[%s2 + $0xb0] sm:$0xff]
    %v52 = vld [vmem:[%s2 + $0xb8] sm:$0xff]
    %v53 = vld [vmem:[%s2 + $0xc0] sm:$0xff]
    %v54 = vld [vmem:[%s2 + $0xc8] sm:$0xff]
    %v55 = vld [vmem:[%s2 + $0xd0] sm:$0xff]
    %v56 = vld [vmem:[%s2 + $0xd8] sm:$0xff]
    %v57 = vld [vmem:[%s2 + $0xe0] sm:$0xff]
    %v58 = vld [vmem:[%s2 + $0xe8] sm:$0xff]
    %v59 = vld [vmem:[%s2 + $0xf0] sm:$0xff]
    %v60 = vld [vmem:[%s2 + $0xf8] sm:$0xff]
    %v61 = vld [vmem:[%s2 + $0x100] sm:$0xff]
    %v62 = vld [vmem:[%s2 + $0x108] sm:$0xff]
    %v63 = vld [vmem:[%s2 + $0x110] sm:$0xff]
    %v64 = vld [vmem:[%s2 + $0x118] sm:$0xff]
    %v65 = vld [vmem:[%s2 + $0x120] sm:$0xff]
    %v66 = vld [vmem:[%s2 + $0x128] sm:$0xff]
    %v67 = vld [vmem:[%s2 + $0x130] sm:$0xff]
    %v68 = vld [vmem:[%s2 + $0x138] sm:$0xff]
    %v69 = vld [vmem:[%s2 + $0x140] sm:$0xff]
    %v70 = vld [vmem:[%s2 + $0x148] sm:$0xff]
    %v71 = vld [vmem:[%s2 + $0x150] sm:$0xff]
    %v72 = vld [vmem:[%s2 + $0x158] sm:$0xff]
    %v73 = vld [vmem:[%s2 + $0x160] sm:$0xff]
    %v74 = vld [vmem:[%s2 + $0x168] sm:$0xff]
    %v75 = vld [vmem:[%s2 + $0x170] sm:$0xff]
    %v76 = vld [vmem:[%s2 + $0x178] sm:$0xff]
    %v77 = vld [vmem:[%s1] sm:$0xff]
    %v78 = vld [vmem:[%s1 + $0x8] sm:$0xff]
    %v79 = vld [vmem:[%s1 + $0x10] sm:$0xff]
    %v80 = vld [vmem:[%s1 + $0x18] sm:$0xff]
    %v81 = vld [vmem:[%s3] sm:$0xff]
    %v82 = vld [vmem:[%s3 + $0x8] sm:$0xff]
    %v83 = vld [vmem:[%s3 + $0x10] sm:$0xff]
    %v84 = vld [vmem:[%s3 + $0x18] sm:$0xff]
    %v85 = vld [vmem:[%s3 + $0x20] sm:$0xff]
    %v86 = vld [vmem:[%s3 + $0x28] sm:$0xff]
    %v87 = vld [vmem:[%s3 + $0x30] sm:$0xff]
    %v88 = vld [vmem:[%s3 + $0x38] sm:$0xff]
    %v89 = vld [vmem:[%s3 + $0x40] sm:$0xff]
    %v90 = vld [vmem:[%s3 + $0x48] sm:$0xff]
    %v91 = vld [vmem:[%s3 + $0x50] sm:$0xff]
    %v92 = vld [vmem:[%s3 + $0x58] sm:$0xff]
    %v93 = vld [vmem:[%s3 + $0x60] sm:$0xff]
    %v94 = vld [vmem:[%s3 + $0x68] sm:$0xff]
    %v95 = vld [vmem:[%s3 + $0x70] sm:$0xff]
    %v96 = vld [vmem:[%s3 + $0x78] sm:$0xff]
    %v97 = vld [vmem:[%s3 + $0x80] sm:$0xff]
    %v98 = vld [vmem:[%s3 + $0x88] sm:$0xff]
    %v99 = vld [vmem:[%s3 + $0x90] sm:$0xff]
    %v100 = vld [vmem:[%s3 + $0x98] sm:$0xff]
    %v101 = vld [vmem:[%s3 + $0xa0] sm:$0xff]
    %v102 = vld [vmem:[%s3 + $0xa8] sm:$0xff]
    %v103 = vld [vmem:[%s3 + $0xb0] sm:$0xff]
    %v104 = vld [vmem:[%s3 + $0xb8] sm:$0xff]
    %v105 = vld [vmem:[%s3 + $0xc0] sm:$0xff]
    %v106 = vld [vmem:[%s3 + $0xc8] sm:$0xff]
    %v107 = vld [vmem:[%s3 + $0xd0] sm:$0xff]
    %v108 = vld [vmem:[%s3 + $0xd8] sm:$0xff]
    %v109 = vld [vmem:[%s3 + $0xe0] sm:$0xff]
    %v110 = vld [vmem:[%s3 + $0xe8] sm:$0xff]
    %v111 = vld [vmem:[%s3 + $0xf0] sm:$0xff]
    %v112 = vld [vmem:[%s3 + $0xf8] sm:$0xff]
    %v113 = vld [vmem:[%s3 + $0x100] sm:$0xff]
    %v114 = vld [vmem:[%s3 + $0x108] sm:$0xff]
    %v115 = vld [vmem:[%s3 + $0x110] sm:$0xff]
    %v116 = vld [vmem:[%s3 + $0x118] sm:$0xff]
    %v117 = vld [vmem:[%s3 + $0x120] sm:$0xff]
    %v118 = vld [vmem:[%s3 + $0x128] sm:$0xff]
    %v119 = vld [vmem:[%s3 + $0x130] sm:$0xff]
    %v120 = vld [vmem:[%s3 + $0x138] sm:$0xff]
    %v121 = vld [vmem:[%s3 + $0x140] sm:$0xff]
    %v122 = vld [vmem:[%s3 + $0x148] sm:$0xff]
    %v123 = vld [vmem:[%s3 + $0x150] sm:$0xff]
    %v124 = vld [vmem:[%s3 + $0x158] sm:$0xff]
    %v125 = vld [vmem:[%s3 + $0x160] sm:$0xff]
    %v126 = vld [vmem:[%s3 + $0x168] sm:$0xff]
    %v127 = vld [vmem:[%s3 + $0x170] sm:$0xff]
    %v128 = vld [vmem:[%s3 + $0x178] sm:$0xff]
    %v129 = vld [vmem:[%s3 + $0x180] sm:$0xff]
    %v130 = vld [vmem:[%s3 + $0x188] sm:$0xff]
    %v131 = vld [vmem:[%s3 + $0x190] sm:$0xff]
    %v132 = vld [vmem:[%s3 + $0x198] sm:$0xff]
    %v133 = vld [vmem:[%s3 + $0x1a0] sm:$0xff]
    %v134 = vld [vmem:[%s3 + $0x1a8] sm:$0xff]
    %v135 = vld [vmem:[%s3 + $0x1b0] sm:$0xff]
    %v136 = vld [vmem:[%s3 + $0x1b8] sm:$0xff]
    %v137 = vld [vmem:[%s3 + $0x1c0] sm:$0xff]
    %v138 = vld [vmem:[%s3 + $0x1c8] sm:$0xff]
    %v139 = vld [vmem:[%s3 + $0x1d0] sm:$0xff]
    %v140 = vld [vmem:[%s3 + $0x1d8] sm:$0xff]
    %v141 = vld [vmem:[%s3 + $0x1e0] sm:$0xff]
    %v142 = vld [vmem:[%s3 + $0x1e8] sm:$0xff]
    %v143 = vld [vmem:[%s3 + $0x1f0] sm:$0xff]
    %v144 = vld [vmem:[%s3 + $0x1f8] sm:$0xff]
    %v145 = vld [vmem:[%s3 + $0x200] sm:$0xff]
    %v146 = vld [vmem:[%s3 + $0x208] sm:$0xff]
    %v147 = vld [vmem:[%s3 + $0x210] sm:$0xff]
    %v148 = vld [vmem:[%s3 + $0x218] sm:$0xff]
    %v149 = vld [vmem:[%s3 + $0x220] sm:$0xff]
    %v150 = vld [vmem:[%s3 + $0x228] sm:$0xff]
    %v151 = vld [vmem:[%s3 + $0x230] sm:$0xff]
    %v152 = vld [vmem:[%s3 + $0x238] sm:$0xff]
    %v153 = vld [vmem:[%s3 + $0x240] sm:$0xff]
    %v154 = vld [vmem:[%s3 + $0x248] sm:$0xff]
    %v155 = vld [vmem:[%s3 + $0x250] sm:$0xff]
    %v156 = vld [vmem:[%s3 + $0x258] sm:$0xff]
    %v157 = vld [vmem:[%s3 + $0x260] sm:$0xff]
    %v158 = vld [vmem:[%s3 + $0x268] sm:$0xff]
    %v159 = vld [vmem:[%s3 + $0x270] sm:$0xff]
    %v160 = vld [vmem:[%s3 + $0x278] sm:$0xff]
    %v161 = vld [vmem:[%s3 + $0x280] sm:$0xff]
    %v162 = vld [vmem:[%s3 + $0x288] sm:$0xff]
    %v163 = vld [vmem:[%s3 + $0x290] sm:$0xff]
    %v164 = vld [vmem:[%s3 + $0x298] sm:$0xff]
    %v165 = vld [vmem:[%s3 + $0x2a0] sm:$0xff]
    %v166 = vld [vmem:[%s3 + $0x2a8] sm:$0xff]
    %v167 = vld [vmem:[%s3 + $0x2b0] sm:$0xff]
    %v168 = vld [vmem:[%s3 + $0x2b8] sm:$0xff]
    %v169 = vld [vmem:[%s3 + $0x2c0] sm:$0xff]
    %v170 = vld [vmem:[%s3 + $0x2c8] sm:$0xff]
    %v171 = vld [vmem:[%s3 + $0x2d0] sm:$0xff]
    %v172 = vld [vmem:[%s3 + $0x2d8] sm:$0xff]
    %v173 = vld [vmem:[%s3 + $0x2e0] sm:$0xff]
    %v174 = vld [vmem:[%s3 + $0x2e8] sm:$0xff]
    %v175 = vld [vmem:[%s3 + $0x2f0] sm:$0xff]
    %v176 = vld [vmem:[%s3 + $0x2f8] sm:$0xff]
    %v177 = vld [vmem:[%s3 + $0x300] sm:$0xff]
    %v178 = vld [vmem:[%s3 + $0x308] sm:$0xff]
    %v179 = vld [vmem:[%s3 + $0x310] sm:$0xff]
    %v180 = vld [vmem:[%s3 + $0x318] sm:$0xff]
    %v181 = vld [vmem:[%s3 + $0x320] sm:$0xff]
    %v182 = vld [vmem:[%s3 + $0x328] sm:$0xff]
    %v183 = vld [vmem:[%s3 + $0x330] sm:$0xff]
    %v184 = vld [vmem:[%s3 + $0x338] sm:$0xff]
    %v185 = vld [vmem:[%s3 + $0x340] sm:$0xff]
    %v186 = vld [vmem:[%s3 + $0x348] sm:$0xff]
    %v187 = vld [vmem:[%s3 + $0x350] sm:$0xff]
    %v188 = vld [vmem:[%s3 + $0x358] sm:$0xff]
    %v189 = vld [vmem:[%s3 + $0x360] sm:$0xff]
    %v190 = vld [vmem:[%s3 + $0x368] sm:$0xff]
    %v191 = vld [vmem:[%s3 + $0x370] sm:$0xff]
    %v192 = vld [vmem:[%s3 + $0x378] sm:$0xff]
    %v193 = vld [vmem:[%s3 + $0x380] sm:$0xff]
    %v194 = vld [vmem:[%s3 + $0x388] sm:$0xff]
    %v195 = vld [vmem:[%s3 + $0x390] sm:$0xff]
    %v196 = vld [vmem:[%s3 + $0x398] sm:$0xff]
    %v197 = vld [vmem:[%s3 + $0x3a0] sm:$0xff]
    %v198 = vld [vmem:[%s3 + $0x3a8] sm:$0xff]
    %v199 = vld [vmem:[%s3 + $0x3b0] sm:$0xff]
    %v200 = vld [vmem:[%s3 + $0x3b8] sm:$0xff]
    %v201 = vld [vmem:[%s3 + $0x3c0] sm:$0xff]
    %v202 = vld [vmem:[%s3 + $0x3c8] sm:$0xff]
    %v203 = vld [vmem:[%s3 + $0x3d0] sm:$0xff]
    %v204 = vld [vmem:[%s3 + $0x3d8] sm:$0xff]
    %v205 = vld [vmem:[%s3 + $0x3e0] sm:$0xff]
    %v206 = vld [vmem:[%s3 + $0x3e8] sm:$0xff]
    %v207 = vld [vmem:[%s3 + $0x3f0] sm:$0xff]
    %v208 = vld [vmem:[%s3 + $0x3f8] sm:$0xff]
    %209 = vmatprep.subr.mxu0 %v82
    %210 = vmatpush1.msra.mxu0 %v81
    %211 = vmatprep.subr.mxu0 %v84
    %212 = vmatpush1.msra.mxu0 %v83
    %213 = vmatprep.subr.mxu0 %v86
    %214 = vmatpush1.msra.mxu0 %v85
    %215 = vmatprep.subr.mxu0 %v88
    %216 = vmatpush1.msra.mxu0 %v87
    %217 = vmatprep.subr.mxu0 %v90
    %218 = vmatpush1.msra.mxu0 %v89
    %219 = vmatprep.subr.mxu0 %v92
    %220 = vmatpush1.msra.mxu0 %v91
    %221 = vmatprep.subr.mxu0 %v94
    %222 = vmatpush1.msra.mxu0 %v93
    %223 = vmatprep.subr.mxu0 %v96
    %224 = vmatpush1.msra.mxu0 %v95
    %225 = vmatprep.subr.mxu0 %v98
    %226 = vmatpush1.msra.mxu0 %v97
    %227 = vmatprep.subr.mxu0 %v100
    %228 = vmatpush1.msra.mxu0 %v99
    %229 = vmatprep.subr.mxu0 %v102
    %230 = vmatpush1.msra.mxu0 %v101
    %231 = vmatprep.subr.mxu0 %v104
    %232 = vmatpush1.msra.mxu0 %v103
    %233 = vmatprep.subr.mxu0 %v106
    %234 = vmatpush1.msra.mxu0 %v105
    %235 = vmatprep.subr.mxu0 %v108
    %236 = vmatpush1.msra.mxu0 %v107
    %237 = vmatprep.subr.mxu0 %v110
    %238 = vmatpush1.msra.mxu0 %v109
    %239 = vmatprep.subr.mxu0 %v112
    %240 = vmatpush1.msra.mxu0 %v111
    %241 = vmatprep.subr.mxu0 %v114
    %242 = vmatpush1.msra.mxu0 %v113
    %243 = vmatprep.subr.mxu0 %v116
    %244 = vmatpush1.msra.mxu0 %v115
    %245 = vmatprep.subr.mxu0 %v118
    %246 = vmatpush1.msra.mxu0 %v117
    %247 = vmatprep.subr.mxu0 %v120
    %248 = vmatpush1.msra.mxu0 %v119
    %249 = vmatprep.subr.mxu0 %v122
    %250 = vmatpush1.msra.mxu0 %v121
    %251 = vmatprep.subr.mxu0 %v124
    %252 = vmatpush1.msra.mxu0 %v123
    %253 = vmatprep.subr.mxu0 %v126
    %254 = vmatpush1.msra.mxu0 %v125
    %255 = vmatprep.subr.mxu0 %v128
    %256 = vmatpush1.msra.mxu0 %v127
    %257 = vmatprep.subr.mxu0 %v130
    %258 = vmatpush1.msra.mxu0 %v129
    %259 = vmatprep.subr.mxu0 %v132
    %260 = vmatpush1.msra.mxu0 %v131
    %261 = vmatprep.subr.mxu0 %v134
    %262 = vmatpush1.msra.mxu0 %v133
    %263 = vmatprep.subr.mxu0 %v136
    %264 = vmatpush1.msra.mxu0 %v135
    %265 = vmatprep.subr.mxu0 %v138
    %266 = vmatpush1.msra.mxu0 %v137
    %267 = vmatprep.subr.mxu0 %v140
    %268 = vmatpush1.msra.mxu0 %v139
    %269 = vmatprep.subr.mxu0 %v142
    %270 = vmatpush1.msra.mxu0 %v141
    %271 = vmatprep.subr.mxu0 %v144
    %272 = vmatpush1.msra.mxu0 %v143
    %273 = vmatprep.mubr.f32.mxu0 %v78
    %274 = vmatmul.mubr.f32.gmra.mrb[0].mxu0 %v77
    %v275 = vpop.f32.mrb[0].mxu0
    %v276 = vadd.f32 0.0, %v275
    %v277 = vpop.f32.mrb[0].mxu0
    %v278 = vadd.f32 0.0, %v277
    %279 = vdwg.mxu0
    %280 = vmatprep.subr.mxu0 %v146
    %281 = vmatpush1.msra.mxu0 %v145
    %282 = vmatprep.subr.mxu0 %v148
    %283 = vmatpush1.msra.mxu0 %v147
    %284 = vmatprep.subr.mxu0 %v150
    %285 = vmatpush1.msra.mxu0 %v149
    %286 = vmatprep.subr.mxu0 %v152
    %287 = vmatpush1.msra.mxu0 %v151
    %288 = vmatprep.subr.mxu0 %v154
    %289 = vmatpush1.msra.mxu0 %v153
    %290 = vmatprep.subr.mxu0 %v156
    %291 = vmatpush1.msra.mxu0 %v155
    %292 = vmatprep.subr.mxu0 %v158
    %293 = vmatpush1.msra.mxu0 %v157
    %294 = vmatprep.subr.mxu0 %v160
    %295 = vmatpush1.msra.mxu0 %v159
    %296 = vmatprep.subr.mxu0 %v162
    %297 = vmatpush1.msra.mxu0 %v161
    %298 = vmatprep.subr.mxu0 %v164
    %299 = vmatpush1.msra.mxu0 %v163
    %300 = vmatprep.subr.mxu0 %v166
    %301 = vmatpush1.msra.mxu0 %v165
    %302 = vmatprep.subr.mxu0 %v168
    %303 = vmatpush1.msra.mxu0 %v167
    %304 = vmatprep.subr.mxu0 %v170
    %305 = vmatpush1.msra.mxu0 %v169
    %306 = vmatprep.subr.mxu0 %v172
    %307 = vmatpush1.msra.mxu0 %v171
    %308 = vmatprep.subr.mxu0 %v174
    %309 = vmatpush1.msra.mxu0 %v173
    %310 = vmatprep.subr.mxu0 %v176
    %311 = vmatpush1.msra.mxu0 %v175
    %312 = vmatprep.subr.mxu0 %v178
    %313 = vmatpush1.msra.mxu0 %v177
    %314 = vmatprep.subr.mxu0 %v180
    %315 = vmatpush1.msra.mxu0 %v179
    %316 = vmatprep.subr.mxu0 %v182
    %317 = vmatpush1.msra.mxu0 %v181
    %318 = vmatprep.subr.mxu0 %v184
    %319 = vmatpush1.msra.mxu0 %v183
    %320 = vmatprep.subr.mxu0 %v186
    %321 = vmatpush1.msra.mxu0 %v185
    %322 = vmatprep.subr.mxu0 %v188
    %323 = vmatpush1.msra.mxu0 %v187
    %324 = vmatprep.subr.mxu0 %v190
    %325 = vmatpush1.msra.mxu0 %v189
    %326 = vmatprep.subr.mxu0 %v192
    %327 = vmatpush1.msra.mxu0 %v191
    %328 = vmatprep.subr.mxu0 %v194
    %329 = vmatpush1.msra.mxu0 %v193
    %330 = vmatprep.subr.mxu0 %v196
    %331 = vmatpush1.msra.mxu0 %v195
    %332 = vmatprep.subr.mxu0 %v198
    %333 = vmatpush1.msra.mxu0 %v197
    %334 = vmatprep.subr.mxu0 %v200
    %335 = vmatpush1.msra.mxu0 %v199
    %336 = vmatprep.subr.mxu0 %v202
    %337 = vmatpush1.msra.mxu0 %v201
    %338 = vmatprep.subr.mxu0 %v204
    %339 = vmatpush1.msra.mxu0 %v203
    %340 = vmatprep.subr.mxu0 %v206
    %341 = vmatpush1.msra.mxu0 %v205
    %342 = vmatprep.subr.mxu0 %v208
    %343 = vmatpush1.msra.mxu0 %v207
    %344 = vmatprep.mubr.f32.mxu0 %v80
    %345 = vmatmul.mubr.f32.gmra.mrb[0].mxu0 %v79
    %v346 = vpop.f32.mrb[0].mxu0
    %v347 = vadd.f32 %v276, %v346
    %v348 = vpop.f32.mrb[0].mxu0
    %v349 = vadd.f32 %v278, %v348
    %350 = vdwg.mxu0
    %vm351 = vcmask 523264
    %v353 = vsel %vm351, %v28, 0
    %355 = vmatprep.subr.mxu0 %v30
    %356 = vmatpush1.msra.mxu0 %v29
    %357 = vmatprep.subr.mxu0 %v32
    %358 = vmatpush1.msra.mxu0 %v31
    %359 = vmatprep.subr.mxu0 %v34
    %360 = vmatpush1.msra.mxu0 %v33
    %361 = vmatprep.subr.mxu0 %v36
    %362 = vmatpush1.msra.mxu0 %v35
    %363 = vmatprep.subr.mxu0 %v38
    %364 = vmatpush1.msra.mxu0 %v37
    %365 = vmatprep.subr.mxu0 %v40
    %366 = vmatpush1.msra.mxu0 %v39
    %367 = vmatprep.subr.mxu0 %v42
    %368 = vmatpush1.msra.mxu0 %v41
    %369 = vmatprep.subr.mxu0 %v44
    %370 = vmatpush1.msra.mxu0 %v43
    %371 = vmatprep.subr.mxu0 %v46
    %372 = vmatpush1.msra.mxu0 %v45
    %373 = vmatprep.subr.mxu0 %v48
    %374 = vmatpush1.msra.mxu0 %v47
    %375 = vmatprep.subr.mxu0 %v50
    %376 = vmatpush1.msra.mxu0 %v49
    %377 = vmatprep.subr.mxu0 %v52
    %378 = vmatpush1.msra.mxu0 %v51
    %379 = vmatprep.subr.mxu0 %v54
    %380 = vmatpush1.msra.mxu0 %v53
    %381 = vmatprep.subr.mxu0 %v56
    %382 = vmatpush1.msra.mxu0 %v55
    %383 = vmatprep.subr.mxu0 %v58
    %384 = vmatpush1.msra.mxu0 %v57
    %385 = vmatprep.subr.mxu0 %v60
    %386 = vmatpush1.msra.mxu0 %v59
    %387 = vmatprep.subr.mxu0 %v62
    %388 = vmatpush1.msra.mxu0 %v61
    %389 = vmatprep.subr.mxu0 %v64
    %390 = vmatpush1.msra.mxu0 %v63
    %391 = vmatprep.subr.mxu0 %v66
    %392 = vmatpush1.msra.mxu0 %v65
    %393 = vmatprep.subr.mxu0 %v68
    %394 = vmatpush1.msra.mxu0 %v67
    %395 = vmatprep.subr.mxu0 %v70
    %396 = vmatpush1.msra.mxu0 %v69
    %397 = vmatprep.subr.mxu0 %v72
    %398 = vmatpush1.msra.mxu0 %v71
    %399 = vmatprep.subr.mxu0 %v74
    %400 = vmatpush1.msra.mxu0 %v73
    %401 = vmatprep.subr.mxu0 %v76
    %402 = vmatpush1.msra.mxu0 %v75
    %403 = vmatprep.subr.mxu0 0.0
    %404 = vmatpush1.msra.mxu0 0.0
    %405 = vmatprep.subr.mxu0 0.0
    %406 = vmatpush1.msra.mxu0 0.0
    %407 = vmatprep.subr.mxu0 0.0
    %408 = vmatpush1.msra.mxu0 0.0
    %409 = vmatprep.subr.mxu0 0.0
    %410 = vmatpush1.msra.mxu0 0.0
    %411 = vmatprep.subr.mxu0 0.0
    %412 = vmatpush1.msra.mxu0 0.0
    %413 = vmatprep.subr.mxu0 0.0
    %414 = vmatpush1.msra.mxu0 0.0
    %415 = vmatprep.subr.mxu0 0.0
    %416 = vmatpush1.msra.mxu0 0.0
    %417 = vmatprep.subr.mxu0 0.0
    %418 = vmatpush1.msra.mxu0 0.0
    %419 = vmatprep.mubr.f32.mxu0 %v353
    %420 = vmatmul.mubr.f32.gmra.mrb[0].mxu0 %v27
    %v421 = vpop.f32.mrb[0].mxu0
    %v422 = vadd.f32 %v347, %v421
    %v423 = vpop.f32.mrb[0].mxu0
    %v424 = vadd.f32 %v349, %v423
    %425 = vdwg.mxu0
    %v426 = vld [vmem:[%s4] sm:$0x3]
    %v428 = vlaneseq
    %v429 = vshrl.u32 %v428, 7
    %v430 = vsub.s32 0, %v429
    %v431 = vrot.slane %v426, %v430
    %v432 = vlaneseq
    %v433 = vshrl.u32 %v432, 7
    %v434 = vsub.s32 1, %v433
    %v435 = vrot.slane %v426, %v434
    %v438 = vadd.f32 %v422, %v431
    %v439 = vadd.f32 %v424, %v435
    %v440 = vmax.f32 %v438, 0.0
    %v441 = vmax.f32 %v439, 0.0
    %v442 = vld [vmem:[%s5] sm:$0xff]
    %v443 = vld [vmem:[%s5 + $0x8] sm:$0xff]
    %v444 = vld [vmem:[%s5 + $0x10] sm:$0xff]
    %v445 = vld [vmem:[%s5 + $0x18] sm:$0xff]
    %v446 = vld [vmem:[%s5 + $0x20] sm:$0xff]
    %v447 = vld [vmem:[%s5 + $0x28] sm:$0xff]
    %v448 = vld [vmem:[%s5 + $0x30] sm:$0xff]
    %v449 = vld [vmem:[%s5 + $0x38] sm:$0xff]
    %v450 = vld [vmem:[%s5 + $0x40] sm:$0xff]
    %v451 = vld [vmem:[%s5 + $0x48] sm:$0xff]
    %v452 = vld [vmem:[%s5 + $0x50] sm:$0xff]
    %v453 = vld [vmem:[%s5 + $0x58] sm:$0xff]
    %v454 = vld [vmem:[%s5 + $0x60] sm:$0xff]
    %v455 = vld [vmem:[%s5 + $0x68] sm:$0xff]
    %v456 = vld [vmem:[%s5 + $0x70] sm:$0xff]
    %v457 = vld [vmem:[%s5 + $0x78] sm:$0xff]
    %v458 = vld [vmem:[%s5 + $0x80] sm:$0xff]
    %v459 = vld [vmem:[%s5 + $0x88] sm:$0xff]
    %v460 = vld [vmem:[%s5 + $0x90] sm:$0xff]
    %v461 = vld [vmem:[%s5 + $0x98] sm:$0xff]
    %v462 = vld [vmem:[%s5 + $0xa0] sm:$0xff]
    %v463 = vld [vmem:[%s5 + $0xa8] sm:$0xff]
    %v464 = vld [vmem:[%s5 + $0xb0] sm:$0xff]
    %v465 = vld [vmem:[%s5 + $0xb8] sm:$0xff]
    %v466 = vld [vmem:[%s6] sm:$0x1]
    %v468 = vlaneseq
    %v469 = vshrl.u32 %v468, 7
    %v470 = vsub.s32 0, %v469
    %v471 = vrot.slane %v466, %v470
    %v474 = vsel %vm351, %v441, 0
    %476 = vmatprep.subr.mxu0 0.0
    %477 = vmatpush1.msra.mxu0 %v442
    %478 = vmatprep.subr.mxu0 0.0
    %479 = vmatpush1.msra.mxu0 %v443
    %480 = vmatprep.subr.mxu0 0.0
    %481 = vmatpush1.msra.mxu0 %v444
    %482 = vmatprep.subr.mxu0 0.0
    %483 = vmatpush1.msra.mxu0 %v445
    %484 = vmatprep.subr.mxu0 0.0
    %485 = vmatpush1.msra.mxu0 %v446
    %486 = vmatprep.subr.mxu0 0.0
    %487 = vmatpush1.msra.mxu0 %v447
    %488 = vmatprep.subr.mxu0 0.0
    %489 = vmatpush1.msra.mxu0 %v448
    %490 = vmatprep.subr.mxu0 0.0
    %491 = vmatpush1.msra.mxu0 %v449
    %492 = vmatprep.subr.mxu0 0.0
    %493 = vmatpush1.msra.mxu0 %v450
    %494 = vmatprep.subr.mxu0 0.0
    %495 = vmatpush1.msra.mxu0 %v451
    %496 = vmatprep.subr.mxu0 0.0
    %497 = vmatpush1.msra.mxu0 %v452
    %498 = vmatprep.subr.mxu0 0.0
    %499 = vmatpush1.msra.mxu0 %v453
    %500 = vmatprep.subr.mxu0 0.0
    %501 = vmatpush1.msra.mxu0 %v454
    %502 = vmatprep.subr.mxu0 0.0
    %503 = vmatpush1.msra.mxu0 %v455
    %504 = vmatprep.subr.mxu0 0.0
    %505 = vmatpush1.msra.mxu0 %v456
    %506 = vmatprep.subr.mxu0 0.0
    %507 = vmatpush1.msra.mxu0 %v457
    %508 = vmatprep.subr.mxu0 0.0
    %509 = vmatpush1.msra.mxu0 %v458
    %510 = vmatprep.subr.mxu0 0.0
    %511 = vmatpush1.msra.mxu0 %v459
    %512 = vmatprep.subr.mxu0 0.0
    %513 = vmatpush1.msra.mxu0 %v460
    %514 = vmatprep.subr.mxu0 0.0
    %515 = vmatpush1.msra.mxu0 %v461
    %516 = vmatprep.subr.mxu0 0.0
    %517 = vmatpush1.msra.mxu0 %v462
    %518 = vmatprep.subr.mxu0 0.0
    %519 = vmatpush1.msra.mxu0 %v463
    %520 = vmatprep.subr.mxu0 0.0
    %521 = vmatpush1.msra.mxu0 %v464
    %522 = vmatprep.subr.mxu0 0.0
    %523 = vmatpush1.msra.mxu0 %v465
    %524 = vmatprep.subr.mxu0 0.0
    %525 = vmatpush1.msra.mxu0 0.0
    %526 = vmatprep.subr.mxu0 0.0
    %527 = vmatpush1.msra.mxu0 0.0
    %528 = vmatprep.subr.mxu0 0.0
    %529 = vmatpush1.msra.mxu0 0.0
    %530 = vmatprep.subr.mxu0 0.0
    %531 = vmatpush1.msra.mxu0 0.0
    %532 = vmatprep.subr.mxu0 0.0
    %533 = vmatpush1.msra.mxu0 0.0
    %534 = vmatprep.subr.mxu0 0.0
    %535 = vmatpush1.msra.mxu0 0.0
    %536 = vmatprep.subr.mxu0 0.0
    %537 = vmatpush1.msra.mxu0 0.0
    %538 = vmatprep.subr.mxu0 0.0
    %539 = vmatpush1.msra.mxu0 0.0
    %540 = vmatprep.mubr.f32.mxu0 %v474
    %541 = vmatmul.mubr.f32.gmra.mrb[0].mxu0 %v440
    %v542 = vpop.f32.mrb[0].mxu0
    %v543 = vadd.f32 %v471, %v542
    %v544 = vpop.f32.mrb[0].mxu0
    %545 = vdwg.mxu0
    %546 = vst [vmem:[#allocation2] sm:$0xff] %v543
    // Predicated region
    $region30: #{tpu_custom_call.1} parent=1 // pred_check
      _
    $region31: #{tpu_custom_call.1} parent=1 // pred_check_branch
      %548 = sbr.rel (0) target = $region33
    $region32: #{tpu_custom_call.1} parent=1 // pred_region
      %s550 = ssub.s32 128, 128
      %551 = vsyncadd [#allocation3], %s550
      %s553 = sshll.u32 [#allocation2], 4
      %s554 = int_to_ptr.vmem [resolvable:$true] %s553
      %556 = dma.vmem_to_hbm [thread:$0]  %s554, 128, %s7, [#allocation3]
    $region33: #{tpu_custom_call.1} parent=1 // pred_fallthru
      _
    // Predicated region
    $region34: #{tpu_custom_call.1} parent=1 // pred_check
      _
    $region35: #{tpu_custom_call.1} parent=1 // pred_check_branch
      %558 = sbr.rel (0) target = $region37
    $region36: #{tpu_custom_call.1} parent=1 // pred_region
      %559 = dma.done [#allocation3], 128
    $region37: #{tpu_custom_call.1} parent=1 // pred_fallthru
      _
    %560 = vsyncpa [#allocation3], 1

</llo_original>
